<compile_context>
chip_gen: v7x
topology: tpu7x:2x2x1
jax: 0.10.0
libtpu: 0.0.40
codegen_flags: <defaults>
</compile_context>

<pallas_src>
import jax
import jax.numpy as jnp
from jax.experimental import pallas as pl
from jax.experimental.pallas import tpu as pltpu


def _pick_tile_n(N, B, C, Fd, mxu_itemsize, out_itemsize, vmem_budget_bytes):
    """Largest tile_n dividing N whose double-buffered working set fits the budget."""

    def working_set(t):
        a_tile = C * t * Fd * mxu_itemsize          # A tile (streamed, bf16)
        out_tile = B * t * Fd * out_itemsize        # output tile
        bias_tile = t * Fd * 4                      # bias tile (f32)
        x_tile = B * C * mxu_itemsize               # x (resident every step)
        interm = 2 * B * t * Fd * 4                 # f32 logits + softmax temps
        return 2 * (a_tile + out_tile + bias_tile + x_tile) + interm

    divisors = [t for t in range(N, 0, -1) if N % t == 0]
    fitting = [t for t in divisors if working_set(t) <= vmem_budget_bytes]
    if not fitting:
        return 1, working_set(1)
    # Prefer an even grid of >= 2 steps (keeps both v7x TCs busy and gives the
    # pipeline something to overlap); otherwise take the largest fitting tile.
    for t in fitting:
        g = N // t
        if g >= 2 and g % 2 == 0:
            return t, working_set(t)
    for t in fitting:
        if N // t >= 2:
            return t, working_set(t)
    return fitting[0], working_set(fitting[0])


def disease_feature_projector(x, A, b, *, tile_n=None,
                              mxu_dtype=jnp.bfloat16,
                              out_dtype=jnp.float32,
                              vmem_budget_bytes=48 * 1024 * 1024):
    """Mirrors DiseaseFeatureProjector.forward.

    x: (B, C)   A: (N, C, F)   b: (N, F)   ->   F_v: (B, N, F)
    """
    B, C = x.shape
    N, C2, Fd = A.shape
    assert C2 == C and b.shape == (N, Fd)

    mxu_itemsize = jnp.dtype(mxu_dtype).itemsize
    out_itemsize = jnp.dtype(out_dtype).itemsize

    if tile_n is None:
        tile_n, working = _pick_tile_n(N, B, C, Fd, mxu_itemsize, out_itemsize,
                                       vmem_budget_bytes)
    else:
        assert N % tile_n == 0, "num_diseases must be divisible by tile_n"
        working, _ = (_pick_tile_n(tile_n, B, C, Fd, mxu_itemsize, out_itemsize,
                                   vmem_budget_bytes)[1], None)
    grid = (N // tile_n,)

    # Explicit scoped-VMEM limit with headroom (stays <= 64 MiB at the default
    # budget, so it is valid on v7x as well as v5e/v6e).
    vmem_limit_bytes = int(min(max(working * 5 // 4 + (4 << 20), 32 << 20), 120 << 20))

    # One-time weight relayout: (N, C, F) -> (C, N*F).  The kernel contracts
    # x's C with A's leading axis in a single lane-wide matmul; the streamed
    # dtype is bf16 (MXU-native on all generations), halving HBM traffic on A.
    A_2d = jnp.transpose(A, (1, 0, 2)).reshape(C, N * Fd).astype(mxu_dtype)
    b_2d = b.reshape(1, N * Fd).astype(jnp.float32)
    x_mxu = x.astype(mxu_dtype)

    def kernel(x_ref, a_ref, b_ref, o_ref):
        # (B, C) @ (C, tile_n*F) -> (B, tile_n*F); bf16 operands, f32 accumulate.
        s = jnp.dot(x_ref[...], a_ref[...],
                    preferred_element_type=jnp.float32)
        s = s + b_ref[...]                                    # (1, TN*F) bcast

        # Per-disease softmax over its F lanes.  Static, lane-aligned slices
        # (F multiple of 128 in practice) — no in-kernel reshape/relayout.
        for t in range(tile_n):
            lo = t * Fd
            st = s[:, lo:lo + Fd]                             # (B, F) f32
            st = st - jnp.max(st, axis=-1, keepdims=True)
            pt = jnp.exp(st)
            denom = jnp.sum(pt, axis=-1, keepdims=True)
            pt = pt * pl.reciprocal(denom, approx=True)       # divide -> EUP
            o_ref[:, lo:lo + Fd] = pt.astype(o_ref.dtype)

    cost = pl.CostEstimate(
        flops=2 * B * N * C * Fd,
        transcendentals=B * N * Fd,
        bytes_accessed=(A_2d.size * mxu_itemsize
                        + x_mxu.size * mxu_itemsize
                        + b_2d.size * 4
                        + B * N * Fd * out_itemsize),
    )

    out_flat = pl.pallas_call(
        kernel,
        out_shape=jax.ShapeDtypeStruct((B, N * Fd), out_dtype),
        grid=grid,
        in_specs=[
            pl.BlockSpec((B, C), lambda n: (0, 0)),            # x (whole batch)
            pl.BlockSpec((C, tile_n * Fd), lambda n: (0, n)),  # A tile (streamed)
            pl.BlockSpec((1, tile_n * Fd), lambda n: (0, n)),  # bias tile
        ],
        out_specs=pl.BlockSpec((B, tile_n * Fd), lambda n: (0, n)),
        compiler_params=pltpu.CompilerParams(
            dimension_semantics=("parallel",),
            vmem_limit_bytes=vmem_limit_bytes),
        cost_estimate=cost,
    )(x_mxu, A_2d, b_2d)

    # Contiguous split of the last dim: free (no data movement), unlike a transpose.
    return out_flat.reshape(B, N, Fd)


if __name__ == "__main__":
    # Small shapes consistent with the module: B=2 batch, C=32 input dim,
    # N=16 diseases, F=128 feature dim (lane-dense last axis).
    B, C, N, Fd = 2, 32, 16, 128

    key = jax.random.PRNGKey(0)
    kx, ka, kb = jax.random.split(key, 3)
    x = jax.random.normal(kx, (B, C), dtype=jnp.float32)
    # 0.05 scale keeps the softmax well-conditioned for the numerical check.
    A = (0.05 * jax.random.normal(ka, (N, C, Fd))).astype(jnp.float32)
    b = (0.05 * jax.random.normal(kb, (N, Fd))).astype(jnp.float32)

    F_v = disease_feature_projector(x, A, b)
    jax.block_until_ready(F_v)

    assert F_v.shape == (B, N, Fd)

    # Reference (plain JAX, f32) check of the forward semantics.
    ref = jax.nn.softmax(jnp.einsum('bc,ncf->bnf', x, A) + b[None], axis=-1)
    max_err = float(jnp.max(jnp.abs(F_v - ref)))
    assert jnp.allclose(F_v, ref, atol=2e-3, rtol=2e-3), max_err

    print("KERNEL_OK")
</pallas_src>

<mosaic_0001>
module attributes {stable_mosaic.version = 11 : i64} {
  func.func @kernel(%arg0: i32, %arg1: memref<2x32xbf16, #tpu.memory_space<vmem>>, %arg2: memref<32x1024xbf16, #tpu.memory_space<vmem>>, %arg3: memref<1x1024xf32, #tpu.memory_space<vmem>>, %arg4: memref<2x1024xf32, #tpu.memory_space<vmem>>) attributes {dimension_semantics = [#tpu.dimension_semantics<parallel>], iteration_bounds = array<i64: 2>, scalar_prefetch = 0 : i64, scratch_operands = 0 : i64, tpu.core_type = #tpu.core_type<tc>, window_params = [{pipeline_mode = #tpu.pipeline_mode<synchronous>, transform_indices = @transform_0, window_bounds = array<i64: 2, 32>}, {transform_indices = @transform_1, window_bounds = array<i64: 32, 1024>}, {transform_indices = @transform_2, window_bounds = array<i64: 1, 1024>}, {transform_indices = @transform_3, window_bounds = array<i64: 2, 1024>}]} {
    %c0 = arith.constant 0 : index
    %c0_0 = arith.constant 0 : index
    %0 = vector.load %arg1[%c0, %c0_0] : memref<2x32xbf16, #tpu.memory_space<vmem>>, vector<2x32xbf16>
    %c0_1 = arith.constant 0 : index
    %c0_2 = arith.constant 0 : index
    %1 = vector.load %arg2[%c0_1, %c0_2] : memref<32x1024xbf16, #tpu.memory_space<vmem>>, vector<32x1024xbf16>
    %cst = arith.constant dense<0.000000e+00> : vector<2x1024xf32>
    %2 = tpu.matmul %0, %1, %cst {dimension_numbers = #tpu.dot_dimension_numbers<[1], [0], [0], [1], [0, 0, 1, 1], [], []>} : vector<2x32xbf16>, vector<32x1024xbf16>, vector<2x1024xf32> -> vector<2x1024xf32>
    %c0_3 = arith.constant 0 : index
    %c0_4 = arith.constant 0 : index
    %3 = vector.load %arg3[%c0_3, %c0_4] : memref<1x1024xf32, #tpu.memory_space<vmem>>, vector<1x1024xf32>
    %4 = vector.broadcast %3 : vector<1x1024xf32> to vector<2x1024xf32>
    %5 = arith.addf %2, %4 : vector<2x1024xf32>
    %6 = vector.extract_strided_slice %5 {offsets = [0, 0], sizes = [2, 128], strides = [1, 1]} : vector<2x1024xf32> to vector<2x128xf32>
    %cst_5 = arith.constant dense<0xFF800000> : vector<2xf32>
    %7 = vector.multi_reduction <maximumf>, %6, %cst_5 [1] : vector<2x128xf32> to vector<2xf32>
    %8 = vector.shape_cast %7 : vector<2xf32> to vector<2x1xf32>
    %9 = vector.broadcast %8 : vector<2x1xf32> to vector<2x128xf32>
    %10 = arith.subf %6, %9 : vector<2x128xf32>
    %11 = math.exp %10 : vector<2x128xf32>
    %cst_6 = arith.constant dense<0.000000e+00> : vector<2xf32>
    %12 = vector.multi_reduction <add>, %11, %cst_6 [1] : vector<2x128xf32> to vector<2xf32>
    %13 = vector.shape_cast %12 : vector<2xf32> to vector<2x1xf32>
    %14 = tpu.reciprocal %13 {approx = true} : vector<2x1xf32> -> vector<2x1xf32>
    %15 = vector.broadcast %14 : vector<2x1xf32> to vector<2x128xf32>
    %16 = arith.mulf %11, %15 : vector<2x128xf32>
    %c0_7 = arith.constant 0 : index
    %c0_8 = arith.constant 0 : index
    %17 = vector.load %arg4[%c0_7, %c0_8] : memref<2x1024xf32, #tpu.memory_space<vmem>>, vector<2x128xf32>
    tpu.vector_store %arg4[%c0_7, %c0_8], %16 {strides = array<i32>} : memref<2x1024xf32, #tpu.memory_space<vmem>>, vector<2x128xf32>,
    %18 = vector.extract_strided_slice %5 {offsets = [0, 128], sizes = [2, 128], strides = [1, 1]} : vector<2x1024xf32> to vector<2x128xf32>
    %cst_9 = arith.constant dense<0xFF800000> : vector<2xf32>
    %19 = vector.multi_reduction <maximumf>, %18, %cst_9 [1] : vector<2x128xf32> to vector<2xf32>
    %20 = vector.shape_cast %19 : vector<2xf32> to vector<2x1xf32>
    %21 = vector.broadcast %20 : vector<2x1xf32> to vector<2x128xf32>
    %22 = arith.subf %18, %21 : vector<2x128xf32>
    %23 = math.exp %22 : vector<2x128xf32>
    %cst_10 = arith.constant dense<0.000000e+00> : vector<2xf32>
    %24 = vector.multi_reduction <add>, %23, %cst_10 [1] : vector<2x128xf32> to vector<2xf32>
    %25 = vector.shape_cast %24 : vector<2xf32> to vector<2x1xf32>
    %26 = tpu.reciprocal %25 {approx = true} : vector<2x1xf32> -> vector<2x1xf32>
    %27 = vector.broadcast %26 : vector<2x1xf32> to vector<2x128xf32>
    %28 = arith.mulf %23, %27 : vector<2x128xf32>
    %c0_11 = arith.constant 0 : index
    %c128 = arith.constant 128 : index
    %29 = vector.load %arg4[%c0_11, %c128] : memref<2x1024xf32, #tpu.memory_space<vmem>>, vector<2x128xf32>
    tpu.vector_store %arg4[%c0_11, %c128], %28 {strides = array<i32>} : memref<2x1024xf32, #tpu.memory_space<vmem>>, vector<2x128xf32>,
    %30 = vector.extract_strided_slice %5 {offsets = [0, 256], sizes = [2, 128], strides = [1, 1]} : vector<2x1024xf32> to vector<2x128xf32>
    %cst_12 = arith.constant dense<0xFF800000> : vector<2xf32>
    %31 = vector.multi_reduction <maximumf>, %30, %cst_12 [1] : vector<2x128xf32> to vector<2xf32>
    %32 = vector.shape_cast %31 : vector<2xf32> to vector<2x1xf32>
    %33 = vector.broadcast %32 : vector<2x1xf32> to vector<2x128xf32>
    %34 = arith.subf %30, %33 : vector<2x128xf32>
    %35 = math.exp %34 : vector<2x128xf32>
    %cst_13 = arith.constant dense<0.000000e+00> : vector<2xf32>
    %36 = vector.multi_reduction <add>, %35, %cst_13 [1] : vector<2x128xf32> to vector<2xf32>
    %37 = vector.shape_cast %36 : vector<2xf32> to vector<2x1xf32>
    %38 = tpu.reciprocal %37 {approx = true} : vector<2x1xf32> -> vector<2x1xf32>
    %39 = vector.broadcast %38 : vector<2x1xf32> to vector<2x128xf32>
    %40 = arith.mulf %35, %39 : vector<2x128xf32>
    %c0_14 = arith.constant 0 : index
    %c256 = arith.constant 256 : index
    %41 = vector.load %arg4[%c0_14, %c256] : memref<2x1024xf32, #tpu.memory_space<vmem>>, vector<2x128xf32>
    tpu.vector_store %arg4[%c0_14, %c256], %40 {strides = array<i32>} : memref<2x1024xf32, #tpu.memory_space<vmem>>, vector<2x128xf32>,
    %42 = vector.extract_strided_slice %5 {offsets = [0, 384], sizes = [2, 128], strides = [1, 1]} : vector<2x1024xf32> to vector<2x128xf32>
    %cst_15 = arith.constant dense<0xFF800000> : vector<2xf32>
    %43 = vector.multi_reduction <maximumf>, %42, %cst_15 [1] : vector<2x128xf32> to vector<2xf32>
    %44 = vector.shape_cast %43 : vector<2xf32> to vector<2x1xf32>
    %45 = vector.broadcast %44 : vector<2x1xf32> to vector<2x128xf32>
    %46 = arith.subf %42, %45 : vector<2x128xf32>
    %47 = math.exp %46 : vector<2x128xf32>
    %cst_16 = arith.constant dense<0.000000e+00> : vector<2xf32>
    %48 = vector.multi_reduction <add>, %47, %cst_16 [1] : vector<2x128xf32> to vector<2xf32>
    %49 = vector.shape_cast %48 : vector<2xf32> to vector<2x1xf32>
    %50 = tpu.reciprocal %49 {approx = true} : vector<2x1xf32> -> vector<2x1xf32>
    %51 = vector.broadcast %50 : vector<2x1xf32> to vector<2x128xf32>
    %52 = arith.mulf %47, %51 : vector<2x128xf32>
    %c0_17 = arith.constant 0 : index
    %c384 = arith.constant 384 : index
    %53 = vector.load %arg4[%c0_17, %c384] : memref<2x1024xf32, #tpu.memory_space<vmem>>, vector<2x128xf32>
    tpu.vector_store %arg4[%c0_17, %c384], %52 {strides = array<i32>} : memref<2x1024xf32, #tpu.memory_space<vmem>>, vector<2x128xf32>,
    %54 = vector.extract_strided_slice %5 {offsets = [0, 512], sizes = [2, 128], strides = [1, 1]} : vector<2x1024xf32> to vector<2x128xf32>
    %cst_18 = arith.constant dense<0xFF800000> : vector<2xf32>
    %55 = vector.multi_reduction <maximumf>, %54, %cst_18 [1] : vector<2x128xf32> to vector<2xf32>
    %56 = vector.shape_cast %55 : vector<2xf32> to vector<2x1xf32>
    %57 = vector.broadcast %56 : vector<2x1xf32> to vector<2x128xf32>
    %58 = arith.subf %54, %57 : vector<2x128xf32>
    %59 = math.exp %58 : vector<2x128xf32>
    %cst_19 = arith.constant dense<0.000000e+00> : vector<2xf32>
    %60 = vector.multi_reduction <add>, %59, %cst_19 [1] : vector<2x128xf32> to vector<2xf32>
    %61 = vector.shape_cast %60 : vector<2xf32> to vector<2x1xf32>
    %62 = tpu.reciprocal %61 {approx = true} : vector<2x1xf32> -> vector<2x1xf32>
    %63 = vector.broadcast %62 : vector<2x1xf32> to vector<2x128xf32>
    %64 = arith.mulf %59, %63 : vector<2x128xf32>
    %c0_20 = arith.constant 0 : index
    %c512 = arith.constant 512 : index
    %65 = vector.load %arg4[%c0_20, %c512] : memref<2x1024xf32, #tpu.memory_space<vmem>>, vector<2x128xf32>
    tpu.vector_store %arg4[%c0_20, %c512], %64 {strides = array<i32>} : memref<2x1024xf32, #tpu.memory_space<vmem>>, vector<2x128xf32>,
    %66 = vector.extract_strided_slice %5 {offsets = [0, 640], sizes = [2, 128], strides = [1, 1]} : vector<2x1024xf32> to vector<2x128xf32>
    %cst_21 = arith.constant dense<0xFF800000> : vector<2xf32>
    %67 = vector.multi_reduction <maximumf>, %66, %cst_21 [1] : vector<2x128xf32> to vector<2xf32>
    %68 = vector.shape_cast %67 : vector<2xf32> to vector<2x1xf32>
    %69 = vector.broadcast %68 : vector<2x1xf32> to vector<2x128xf32>
    %70 = arith.subf %66, %69 : vector<2x128xf32>
    %71 = math.exp %70 : vector<2x128xf32>
    %cst_22 = arith.constant dense<0.000000e+00> : vector<2xf32>
    %72 = vector.multi_reduction <add>, %71, %cst_22 [1] : vector<2x128xf32> to vector<2xf32>
    %73 = vector.shape_cast %72 : vector<2xf32> to vector<2x1xf32>
    %74 = tpu.reciprocal %73 {approx = true} : vector<2x1xf32> -> vector<2x1xf32>
    %75 = vector.broadcast %74 : vector<2x1xf32> to vector<2x128xf32>
    %76 = arith.mulf %71, %75 : vector<2x128xf32>
    %c0_23 = arith.constant 0 : index
    %c640 = arith.constant 640 : index
    %77 = vector.load %arg4[%c0_23, %c640] : memref<2x1024xf32, #tpu.memory_space<vmem>>, vector<2x128xf32>
    tpu.vector_store %arg4[%c0_23, %c640], %76 {strides = array<i32>} : memref<2x1024xf32, #tpu.memory_space<vmem>>, vector<2x128xf32>,
    %78 = vector.extract_strided_slice %5 {offsets = [0, 768], sizes = [2, 128], strides = [1, 1]} : vector<2x1024xf32> to vector<2x128xf32>
    %cst_24 = arith.constant dense<0xFF800000> : vector<2xf32>
    %79 = vector.multi_reduction <maximumf>, %78, %cst_24 [1] : vector<2x128xf32> to vector<2xf32>
    %80 = vector.shape_cast %79 : vector<2xf32> to vector<2x1xf32>
    %81 = vector.broadcast %80 : vector<2x1xf32> to vector<2x128xf32>
    %82 = arith.subf %78, %81 : vector<2x128xf32>
    %83 = math.exp %82 : vector<2x128xf32>
    %cst_25 = arith.constant dense<0.000000e+00> : vector<2xf32>
    %84 = vector.multi_reduction <add>, %83, %cst_25 [1] : vector<2x128xf32> to vector<2xf32>
    %85 = vector.shape_cast %84 : vector<2xf32> to vector<2x1xf32>
    %86 = tpu.reciprocal %85 {approx = true} : vector<2x1xf32> -> vector<2x1xf32>
    %87 = vector.broadcast %86 : vector<2x1xf32> to vector<2x128xf32>
    %88 = arith.mulf %83, %87 : vector<2x128xf32>
    %c0_26 = arith.constant 0 : index
    %c768 = arith.constant 768 : index
    %89 = vector.load %arg4[%c0_26, %c768] : memref<2x1024xf32, #tpu.memory_space<vmem>>, vector<2x128xf32>
    tpu.vector_store %arg4[%c0_26, %c768], %88 {strides = array<i32>} : memref<2x1024xf32, #tpu.memory_space<vmem>>, vector<2x128xf32>,
    %90 = vector.extract_strided_slice %5 {offsets = [0, 896], sizes = [2, 128], strides = [1, 1]} : vector<2x1024xf32> to vector<2x128xf32>
    %cst_27 = arith.constant dense<0xFF800000> : vector<2xf32>
    %91 = vector.multi_reduction <maximumf>, %90, %cst_27 [1] : vector<2x128xf32> to vector<2xf32>
    %92 = vector.shape_cast %91 : vector<2xf32> to vector<2x1xf32>
    %93 = vector.broadcast %92 : vector<2x1xf32> to vector<2x128xf32>
    %94 = arith.subf %90, %93 : vector<2x128xf32>
    %95 = math.exp %94 : vector<2x128xf32>
    %cst_28 = arith.constant dense<0.000000e+00> : vector<2xf32>
    %96 = vector.multi_reduction <add>, %95, %cst_28 [1] : vector<2x128xf32> to vector<2xf32>
    %97 = vector.shape_cast %96 : vector<2xf32> to vector<2x1xf32>
    %98 = tpu.reciprocal %97 {approx = true} : vector<2x1xf32> -> vector<2x1xf32>
    %99 = vector.broadcast %98 : vector<2x1xf32> to vector<2x128xf32>
    %100 = arith.mulf %95, %99 : vector<2x128xf32>
    %c0_29 = arith.constant 0 : index
    %c896 = arith.constant 896 : index
    %101 = vector.load %arg4[%c0_29, %c896] : memref<2x1024xf32, #tpu.memory_space<vmem>>, vector<2x128xf32>
    tpu.vector_store %arg4[%c0_29, %c896], %100 {strides = array<i32>} : memref<2x1024xf32, #tpu.memory_space<vmem>>, vector<2x128xf32>,
    return
  }
  func.func @transform_0(%arg0: i32) -> (i32, i32) {
    %c0_i32 = arith.constant 0 : i32
    %c0_i32_0 = arith.constant 0 : i32
    %c0_i32_1 = arith.constant 0 : i32
    return %c0_i32, %c0_i32_0 : i32, i32
  }
  func.func @transform_1(%arg0: i32) -> (i32, i32) {
    %c0_i32 = arith.constant 0 : i32
    %c0_i32_0 = arith.constant 0 : i32
    return %c0_i32, %arg0 : i32, i32
  }
  func.func @transform_2(%arg0: i32) -> (i32, i32) {
    %c0_i32 = arith.constant 0 : i32
    %c0_i32_0 = arith.constant 0 : i32
    return %c0_i32, %arg0 : i32, i32
  }
  func.func @transform_3(%arg0: i32) -> (i32, i32) {
    %c0_i32 = arith.constant 0 : i32
    %c0_i32_0 = arith.constant 0 : i32
    return %c0_i32, %arg0 : i32, i32
  }
}

</mosaic_0001>

<llo_original>
// kernel: tpu_custom_call.1
$region0: #{tpu_custom_call.1}
  #allocation0 [shape = 'u32[]', space=smem, size = 0x4, offset = 0x4, fixed_abs, tag = 'smem constant byte address 0x4 - core index']
  #allocation1 [shape = 'u32[144,128]{1,0:T(1,128)}', space=vmem, size = 0x12000, scoped, tag = 'internal scratch']
  %s0 = inlined_call_operand.hbm [shape: bf16[2,32], index: 0, kind: input, shape index: {}]
  %s1 = inlined_call_operand.hbm [shape: bf16[32,2048], index: 1, kind: input, shape index: {}]
  %s2 = inlined_call_operand.hbm [shape: f32[1,2048], index: 2, kind: input, shape index: {}]
  %s3 = inlined_call_operand.hbm [shape: f32[2,2048], index: 3, kind: output, shape index: {}]
  %s4 = sld [smem:[#allocation0]]
  $region57: #{tpu_custom_call.1} parent=0
    _
  %s6 = ssub.s32 1, %s4
  %s7 = scalar_select 0, %s6, %s4
  $region1: #{tpu_custom_call.1} parent=0
    #allocation2 [shape = 'u8[512]{0}', space=vmem, size = 0x400, scoped, tag = 'input window, operand 0, single buffered']
    #allocation3 [shape = 's32[2]{0}', space=sflag, size = 0x8, scoped, tag = 'scoped memory for tpu_custom_call.1']
    #allocation4 [shape = 's32[2]{0}', space=sflag, size = 0x8, scoped, tag = 'scoped memory for tpu_custom_call.1']
    #allocation5 [shape = 'u8[131072]{0}', space=vmem, size = 0x20000, scoped, tag = 'input window, operand 1']
    #allocation6 [shape = 's32[2]{0}', space=sflag, size = 0x8, scoped, tag = 'scoped memory for tpu_custom_call.1']
    #allocation7 [shape = 'u8[8192]{0}', space=vmem, size = 0x2000, scoped, tag = 'input window, operand 2']
    #allocation8 [shape = 'u8[16384]{0}', space=vmem, size = 0x4000, scoped, tag = 'output window, operand 0']
    %8 = vsyncpa [#allocation3], 0
    %9 = vsyncpa [#allocation6], 0
    %s10 = scalar_lea.sflag [#allocation6], 1
    %11 = vsyncpa %s10, 0
    %12 = vsyncpa [#allocation4], 0
    %s13 = scalar_lea.sflag [#allocation4], 1
    %14 = vsyncpa %s13, 0
    loop: start=0, step=1, limit=4
    $region2: #{tpu_custom_call.1} parent=1 // loop_pre_header
      _
    $region3: #{tpu_custom_call.1} parent=1 // loop_header
      %s16 = sphi 0, %s20
      %p17 = scmp.ge.s32.totalorder %s16, 4
      %s24 = sphi 0, %s24
      %s26 = sphi 0, %s24
      %s27 = sphi 0, %s26
      %s41 = sphi 0, %s27
      %s47 = sphi 0, %s49
      %s50 = sphi 0, %s47
      %s51 = sphi 0, %s50
      %s67 = sphi 0, %s51
      %s73 = sphi 0, %s75
      %s76 = sphi 0, %s73
      %s77 = sphi 0, %s76
      %s93 = sphi 0, %s77
      %s99 = sphi 0, %s101
      %s102 = sphi 0, %s99
      %s103 = sphi 0, %s102
      %s119 = sphi 0, %s103
    $region4: #{tpu_custom_call.1} parent=1 // loop_header_branch
      %19 = sbr.rel (%p17) target = $region8
    $region5: #{tpu_custom_call.1} parent=1 // loop_body
      %s21 = ssub.s32 %s16, 1
      %s22 = ssub.s32 %s16, 2
      %s23 = sadd.s32 %s16, 1
      %s25 = sadd.s32 %s24, 1
      %p28 = scmp.eq.s32.totalorder %s16, 1
      %p29 = scmp.ne.s32.totalorder %s24, %s26
      %p30 = scmp.eq.s32.totalorder %s16, 0
      %p31 = por %p29, %p30
      %p32 = scmp.ne.s32.totalorder %s24, %s26
      %p33 = scmp.eq.s32.totalorder %s21, 1
      %p34 = por %p32, %p33
      %p35 = scmp.ne.s32.totalorder %s26, %s27
      %p36 = scmp.eq.s32.totalorder %s21, 0
      %p37 = por %p35, %p36
      %p38 = scmp.ne.s32.totalorder %s26, %s27
      %p39 = scmp.eq.s32.totalorder %s22, 1
      %p40 = por %p38, %p39
      %p42 = scmp.ne.s32.totalorder %s27, %s41
      %p43 = scmp.eq.s32.totalorder %s22, 0
      %p44 = por %p42, %p43
      %s45 = ssub.s32 %s16, %s23
      %p46 = scmp.eq.s32.totalorder %s45, 0
      %s48 = sadd.s32 %s47, 1
      %s49 = scalar_select %p46, %s47, %s48
      %p52 = pneg %p46
      %p53 = scmp.eq.s32.totalorder %s16, 1
      %p54 = por %p52, %p53
      %p55 = scmp.ne.s32.totalorder %s47, %s50
      %p56 = scmp.eq.s32.totalorder %s16, 0
      %p57 = por %p55, %p56
      %p58 = scmp.ne.s32.totalorder %s47, %s50
      %p59 = scmp.eq.s32.totalorder %s21, 1
      %p60 = por %p58, %p59
      %p61 = scmp.ne.s32.totalorder %s50, %s51
      %p62 = scmp.eq.s32.totalorder %s21, 0
      %p63 = por %p61, %p62
      %p64 = scmp.ne.s32.totalorder %s50, %s51
      %p65 = scmp.eq.s32.totalorder %s22, 1
      %p66 = por %p64, %p65
      %p68 = scmp.ne.s32.totalorder %s51, %s67
      %p69 = scmp.eq.s32.totalorder %s22, 0
      %p70 = por %p68, %p69
      %s71 = ssub.s32 %s16, %s23
      %p72 = scmp.eq.s32.totalorder %s71, 0
      %s74 = sadd.s32 %s73, 1
      %s75 = scalar_select %p72, %s73, %s74
      %p78 = pneg %p72
      %p79 = scmp.eq.s32.totalorder %s16, 1
      %p80 = por %p78, %p79
      %p81 = scmp.ne.s32.totalorder %s73, %s76
      %p82 = scmp.eq.s32.totalorder %s16, 0
      %p83 = por %p81, %p82
      %p84 = scmp.ne.s32.totalorder %s73, %s76
      %p85 = scmp.eq.s32.totalorder %s21, 1
      %p86 = por %p84, %p85
      %p87 = scmp.ne.s32.totalorder %s76, %s77
      %p88 = scmp.eq.s32.totalorder %s21, 0
      %p89 = por %p87, %p88
      %p90 = scmp.ne.s32.totalorder %s76, %s77
      %p91 = scmp.eq.s32.totalorder %s22, 1
      %p92 = por %p90, %p91
      %p94 = scmp.ne.s32.totalorder %s77, %s93
      %p95 = scmp.eq.s32.totalorder %s22, 0
      %p96 = por %p94, %p95
      %s97 = ssub.s32 %s16, %s23
      %p98 = scmp.eq.s32.totalorder %s97, 0
      %s100 = sadd.s32 %s99, 1
      %s101 = scalar_select %p98, %s99, %s100
      %p104 = pneg %p98
      %p105 = scmp.eq.s32.totalorder %s16, 1
      %p106 = por %p104, %p105
      %p107 = scmp.ne.s32.totalorder %s99, %s102
      %p108 = scmp.eq.s32.totalorder %s16, 0
      %p109 = por %p107, %p108
      %p110 = scmp.ne.s32.totalorder %s99, %s102
      %p111 = scmp.eq.s32.totalorder %s21, 1
      %p112 = por %p110, %p111
      %p113 = scmp.ne.s32.totalorder %s102, %s103
      %p114 = scmp.eq.s32.totalorder %s21, 0
      %p115 = por %p113, %p114
      %p116 = scmp.ne.s32.totalorder %s102, %s103
      %p117 = scmp.eq.s32.totalorder %s22, 1
      %p118 = por %p116, %p117
      %p120 = scmp.ne.s32.totalorder %s103, %s119
      %p121 = scmp.eq.s32.totalorder %s22, 0
      %p122 = por %p120, %p121
      %p123 = scmp.le.s32.totalorder 1, %s16
      %p124 = scmp.lt.s32.totalorder %s16, 3
      %p125 = pnand %p123, %p124
      %p126 = pneg %p125
      // Predicated region
      $region9: #{tpu_custom_call.1} parent=5 // pred_check
        _
      $region10: #{tpu_custom_call.1} parent=5 // pred_check_branch
        %128 = sbr.rel (%p125) target = $region12
      $region11: #{tpu_custom_call.1} parent=5 // pred_region
        %s129 = ssub.s32 %s16, 1
        // Predicated region
        $region13: #{tpu_custom_call.1} parent=11 // pred_check
          %p130 = pneg %p37
        $region14: #{tpu_custom_call.1} parent=11 // pred_check_branch
          %132 = sbr.rel (%p130) target = $region16
        $region15: #{tpu_custom_call.1} parent=11 // pred_region
          %s134 = ssub.s32 16, 16
          %135 = vsyncadd [#allocation3], %s134
          %s137 = sshll.u32 [#allocation2], 4
          %s138 = int_to_ptr.vmem [resolvable:$true] %s137
          %140 = dma.hbm_to_vmem [thread:$0]  %s0, 16, %s138, [#allocation3]
        $region16: #{tpu_custom_call.1} parent=11 // pred_fallthru
          _
      $region12: #{tpu_custom_call.1} parent=5 // pred_fallthru
        _
      %p141 = scmp.lt.s32.totalorder %s16, 2
      // Predicated region
      $region17: #{tpu_custom_call.1} parent=5 // pred_check
        %p142 = pneg %p141
      $region18: #{tpu_custom_call.1} parent=5 // pred_check_branch
        %144 = sbr.rel (%p142) target = $region20
      $region19: #{tpu_custom_call.1} parent=5 // pred_region
        // Predicated region
        $region21: #{tpu_custom_call.1} parent=19 // pred_check
          %p145 = pneg %p57
        $region22: #{tpu_custom_call.1} parent=19 // pred_check_branch
          %147 = sbr.rel (%p145) target = $region24
        $region23: #{tpu_custom_call.1} parent=19 // pred_region
          %s148 = sand.u32 %s16, 1
          %s149 = scalar_lea.sflag [#allocation6], %s148
          %s150 = sand.u32 %s47, 1
          %s151 = smul.addr %s150, 128
          %s152 = scalar_lea.vmem [#allocation5], %s151
          %s153 = smul.u32 8, %s16
          %s155 = ssub.s32 2048, 2048
          %156 = vsyncadd %s149, %s155
          %s157 = smul.addr %s153, 64
          %s158 = scalar_lea.hbm %s1, %s157
          %s159 = sshll.u32 %s152, 4
          %s160 = int_to_ptr.vmem [resolvable:$true] %s159
          %165 = dma.hbm_to_vmem [thread:$0]  %s158, 2048, %s160, %s149, 1024, 512, 32
        $region24: #{tpu_custom_call.1} parent=19 // pred_fallthru
          _
        // Predicated region
        $region25: #{tpu_custom_call.1} parent=19 // pred_check
          %p166 = pneg %p83
        $region26: #{tpu_custom_call.1} parent=19 // pred_check_branch
          %168 = sbr.rel (%p166) target = $region28
        $region27: #{tpu_custom_call.1} parent=19 // pred_region
          %s169 = sand.u32 %s16, 1
          %s170 = scalar_lea.sflag [#allocation6], %s169
          %s171 = sand.u32 %s73, 1
          %s172 = smul.addr %s171, 8
          %s173 = scalar_lea.vmem [#allocation7], %s172
          %s174 = smul.u32 8, %s16
          %s176 = ssub.s32 128, 128
          %177 = vsyncadd %s170, %s176
          %s178 = smul.addr %s174, 16
          %s179 = scalar_lea.hbm %s2, %s178
          %s181 = sshll.u32 %s173, 4
          %s182 = int_to_ptr.vmem [resolvable:$true] %s181
          %184 = dma.hbm_to_vmem [thread:$0]  %s179, 128, %s182, %s170
        $region28: #{tpu_custom_call.1} parent=19 // pred_fallthru
          _
      $region20: #{tpu_custom_call.1} parent=5 // pred_fallthru
        _
      %p185 = scmp.le.s32.totalorder 1, %s16
      %p186 = scmp.lt.s32.totalorder %s16, 3
      %p187 = pnand %p185, %p186
      %p188 = pneg %p187
      // Predicated region
      $region29: #{tpu_custom_call.1} parent=5 // pred_check
        _
      $region30: #{tpu_custom_call.1} parent=5 // pred_check_branch
        %190 = sbr.rel (%p187) target = $region32
      $region31: #{tpu_custom_call.1} parent=5 // pred_region
        %s191 = ssub.s32 %s16, 1
        // Predicated region
        $region33: #{tpu_custom_call.1} parent=31 // pred_check
          %p192 = pneg %p37
        $region34: #{tpu_custom_call.1} parent=31 // pred_check_branch
          %194 = sbr.rel (%p192) target = $region36
        $region35: #{tpu_custom_call.1} parent=31 // pred_region
          %195 = dma.done [#allocation3], 16
        $region36: #{tpu_custom_call.1} parent=31 // pred_fallthru
          _
        %s196 = sand.u32 %s21, 1
        %s197 = scalar_lea.sflag [#allocation6], %s196
        %s198 = sand.u32 %s50, 1
        %s199 = smul.addr %s198, 128
        %s200 = scalar_lea.vmem [#allocation5], %s199
        // Predicated region
        $region37: #{tpu_custom_call.1} parent=31 // pred_check
          %p201 = pneg %p63
        $region38: #{tpu_custom_call.1} parent=31 // pred_check_branch
          %203 = sbr.rel (%p201) target = $region40
        $region39: #{tpu_custom_call.1} parent=31 // pred_region
          %204 = dma.done %s197, 2048
        $region40: #{tpu_custom_call.1} parent=31 // pred_fallthru
          _
        %s205 = sand.u32 %s21, 1
        %s206 = scalar_lea.sflag [#allocation6], %s205
        %s207 = sand.u32 %s76, 1
        %s208 = smul.addr %s207, 8
        %s209 = scalar_lea.vmem [#allocation7], %s208
        // Predicated region
        $region41: #{tpu_custom_call.1} parent=31 // pred_check
          %p210 = pneg %p89
        $region42: #{tpu_custom_call.1} parent=31 // pred_check_branch
          %212 = sbr.rel (%p210) target = $region44
        $region43: #{tpu_custom_call.1} parent=31 // pred_region
          %213 = dma.done %s206, 128
        $region44: #{tpu_custom_call.1} parent=31 // pred_fallthru
          _
        %p214 = pneg %p37
        %p215 = pneg %p34
        %s216 = sand.u32 %s21, 1
        %s217 = scalar_lea.sflag [#allocation6], %s216
        %s218 = sand.u32 %s50, 1
        %s219 = smul.addr %s218, 128
        %s220 = scalar_lea.vmem [#allocation5], %s219
        %p221 = pneg %p63
        %p222 = pneg %p60
        %s223 = sand.u32 %s21, 1
        %s224 = scalar_lea.sflag [#allocation6], %s223
        %s225 = sand.u32 %s76, 1
        %s226 = smul.addr %s225, 8
        %s227 = scalar_lea.vmem [#allocation7], %s226
        %p228 = pneg %p89
        %p229 = pneg %p86
        %p230 = pneg %p115
        %p231 = pneg %p112
        %s232 = sand.u32 %s102, 1
        %s233 = scalar_lea.sflag [#allocation4], %s232
        %s234 = sand.u32 %s102, 1
        %s235 = smul.addr %s234, 16
        %s236 = scalar_lea.vmem [#allocation8], %s235
        %s237 = smul.u32 8, %s21
        %s238 = smul.u32 8, %s21
        %s239 = smul.u32 8, %s21
        %v241 = vld [vmem:[#allocation2] sm:$0x1]
        %v242 = vld [vmem:[%s200] sm:$0xff]
        %v243 = vld [vmem:[%s200 + $0x8] sm:$0xff]
        %v244 = vld [vmem:[%s200 + $0x10] sm:$0xff]
        %v245 = vld [vmem:[%s200 + $0x18] sm:$0xff]
        %v246 = vld [vmem:[%s200 + $0x20] sm:$0xff]
        %v247 = vld [vmem:[%s200 + $0x28] sm:$0xff]
        %v248 = vld [vmem:[%s200 + $0x30] sm:$0xff]
        %v249 = vld [vmem:[%s200 + $0x38] sm:$0xff]
        %v250 = vld [vmem:[%s200 + $0x40] sm:$0xff]
        %v251 = vld [vmem:[%s200 + $0x48] sm:$0xff]
        %v252 = vld [vmem:[%s200 + $0x50] sm:$0xff]
        %v253 = vld [vmem:[%s200 + $0x58] sm:$0xff]
        %v254 = vld [vmem:[%s200 + $0x60] sm:$0xff]
        %v255 = vld [vmem:[%s200 + $0x68] sm:$0xff]
        %v256 = vld [vmem:[%s200 + $0x70] sm:$0xff]
        %v257 = vld [vmem:[%s200 + $0x78] sm:$0xff]
        %v258 = vld [vmem:[%s209] sm:$0xff]
        %v260 = vlaneseq
        %v261 = vshrl.u32 %v260, 7
        %v262 = vsub.s32 0, %v261
        %v263 = vrot.slane %v258, %v262
        %v264 = vlaneseq
        %v265 = vshrl.u32 %v264, 7
        %v266 = vsub.s32 1, %v265
        %v267 = vrot.slane %v258, %v266
        %v268 = vlaneseq
        %v269 = vshrl.u32 %v268, 7
        %v270 = vsub.s32 2, %v269
        %v271 = vrot.slane %v258, %v270
        %v272 = vlaneseq
        %v273 = vshrl.u32 %v272, 7
        %v274 = vsub.s32 3, %v273
        %v275 = vrot.slane %v258, %v274
        %v276 = vlaneseq
        %v277 = vshrl.u32 %v276, 7
        %v278 = vsub.s32 4, %v277
        %v279 = vrot.slane %v258, %v278
        %v280 = vlaneseq
        %v281 = vshrl.u32 %v280, 7
        %v282 = vsub.s32 5, %v281
        %v283 = vrot.slane %v258, %v282
        %v284 = vlaneseq
        %v285 = vshrl.u32 %v284, 7
        %v286 = vsub.s32 6, %v285
        %v287 = vrot.slane %v258, %v286
        %v288 = vlaneseq
        %v289 = vshrl.u32 %v288, 7
        %v290 = vsub.s32 7, %v289
        %v291 = vrot.slane %v258, %v290
        %v316 = vunpack.c.l.b16 %v242
        %v317 = vunpack.c.h.b16 %v242
        %v318 = vunpack.c.l.b16 %v243
        %v319 = vunpack.c.h.b16 %v243
        %v320 = vunpack.c.l.b16 %v244
        %v321 = vunpack.c.h.b16 %v244
        %v322 = vunpack.c.l.b16 %v245
        %v323 = vunpack.c.h.b16 %v245
        %v324 = vunpack.c.l.b16 %v246
        %v325 = vunpack.c.h.b16 %v246
        %v326 = vunpack.c.l.b16 %v247
        %v327 = vunpack.c.h.b16 %v247
        %v328 = vunpack.c.l.b16 %v248
        %v329 = vunpack.c.h.b16 %v248
        %v330 = vunpack.c.l.b16 %v249
        %v331 = vunpack.c.h.b16 %v249
        %v332 = vunpack.c.l.b16 %v250
        %v333 = vunpack.c.h.b16 %v250
        %v334 = vunpack.c.l.b16 %v251
        %v335 = vunpack.c.h.b16 %v251
        %v336 = vunpack.c.l.b16 %v252
        %v337 = vunpack.c.h.b16 %v252
        %v338 = vunpack.c.l.b16 %v253
        %v339 = vunpack.c.h.b16 %v253
        %v340 = vunpack.c.l.b16 %v254
        %v341 = vunpack.c.h.b16 %v254
        %v342 = vunpack.c.l.b16 %v255
        %v343 = vunpack.c.h.b16 %v255
        %v344 = vunpack.c.l.b16 %v256
        %v345 = vunpack.c.h.b16 %v256
        %v346 = vunpack.c.l.b16 %v257
        %v347 = vunpack.c.h.b16 %v257
        %v348 = vpack.c.b16 %v324, %v316
        %v349 = vpack.c.b16 %v325, %v317
        %v350 = vpack.c.b16 %v326, %v318
        %v351 = vpack.c.b16 %v327, %v319
        %v352 = vpack.c.b16 %v328, %v320
        %v353 = vpack.c.b16 %v329, %v321
        %v354 = vpack.c.b16 %v330, %v322
        %v355 = vpack.c.b16 %v331, %v323
        %v356 = vpack.c.b16 %v340, %v332
        %v357 = vpack.c.b16 %v341, %v333
        %v358 = vpack.c.b16 %v342, %v334
        %v359 = vpack.c.b16 %v343, %v335
        %v360 = vpack.c.b16 %v344, %v336
        %v361 = vpack.c.b16 %v345, %v337
        %v362 = vpack.c.b16 %v346, %v338
        %v363 = vpack.c.b16 %v347, %v339
        %vm380 = vcmask 261120
        %v382 = vsel %vm380, %v241, 0
        %384 = vmatprep.subr.bf16.mxu0 %v349
        %385 = vmatpush1.bf16.msra.mxu0 %v348
        %386 = vmatprep.subr.bf16.mxu0 %v357
        %387 = vmatpush1.bf16.msra.mxu0 %v356
        %388 = vmatprep.subr.bf16.mxu0 0
        %389 = vmatpush1.bf16.msra.mxu0 0
        %390 = vmatprep.subr.bf16.mxu0 0
        %391 = vmatpush1.bf16.msra.mxu0 0
        %392 = vmatprep.subr.bf16.mxu0 0
        %393 = vmatpush1.bf16.msra.mxu0 0
        %394 = vmatprep.subr.bf16.mxu0 0
        %395 = vmatpush1.bf16.msra.mxu0 0
        %396 = vmatprep.subr.bf16.mxu0 0
        %397 = vmatpush1.bf16.msra.mxu0 0
        %398 = vmatprep.subr.bf16.mxu0 0
        %399 = vmatpush1.bf16.msra.mxu0 0
        %400 = vmatprep.subr.bf16.mxu0 0
        %401 = vmatpush1.bf16.msra.mxu0 0
        %402 = vmatprep.subr.bf16.mxu0 0
        %403 = vmatpush1.bf16.msra.mxu0 0
        %404 = vmatprep.subr.bf16.mxu0 0
        %405 = vmatpush1.bf16.msra.mxu0 0
        %406 = vmatprep.subr.bf16.mxu0 0
        %407 = vmatpush1.bf16.msra.mxu0 0
        %408 = vmatprep.subr.bf16.mxu0 0
        %409 = vmatpush1.bf16.msra.mxu0 0
        %410 = vmatprep.subr.bf16.mxu0 0
        %411 = vmatpush1.bf16.msra.mxu0 0
        %412 = vmatprep.subr.bf16.mxu0 0
        %413 = vmatpush1.bf16.msra.mxu0 0
        %414 = vmatprep.subr.bf16.mxu0 0
        %415 = vmatpush1.bf16.msra.mxu0 0
        %416 = vmatprep.mubr.bf16.mxu0 0
        %417 = vmatmul.mubr.bf16.gmra.mrb[0].mxu0 %v382
        %v418 = vpop.f32.mrb[0].mxu0
        %v419 = vadd.f32 %v263, %v418
        %v420 = vpop.f32.mrb[0].mxu0
        %v421 = vadd.f32 %v267, %v420
        %v422 = vpop.f32.mrb[0].mxu0
        %v423 = vpop.f32.mrb[0].mxu0
        %424 = vdwg.mxu0
        %425 = vmatprep.subr.bf16.mxu0 %v351
        %426 = vmatpush1.bf16.msra.mxu0 %v350
        %427 = vmatprep.subr.bf16.mxu0 %v359
        %428 = vmatpush1.bf16.msra.mxu0 %v358
        %429 = vmatprep.subr.bf16.mxu0 0
        %430 = vmatpush1.bf16.msra.mxu0 0
        %431 = vmatprep.subr.bf16.mxu0 0
        %432 = vmatpush1.bf16.msra.mxu0 0
        %433 = vmatprep.subr.bf16.mxu0 0
        %434 = vmatpush1.bf16.msra.mxu0 0
        %435 = vmatprep.subr.bf16.mxu0 0
        %436 = vmatpush1.bf16.msra.mxu0 0
        %437 = vmatprep.subr.bf16.mxu0 0
        %438 = vmatpush1.bf16.msra.mxu0 0
        %439 = vmatprep.subr.bf16.mxu0 0
        %440 = vmatpush1.bf16.msra.mxu0 0
        %441 = vmatprep.subr.bf16.mxu0 0
        %442 = vmatpush1.bf16.msra.mxu0 0
        %443 = vmatprep.subr.bf16.mxu0 0
        %444 = vmatpush1.bf16.msra.mxu0 0
        %445 = vmatprep.subr.bf16.mxu0 0
        %446 = vmatpush1.bf16.msra.mxu0 0
        %447 = vmatprep.subr.bf16.mxu0 0
        %448 = vmatpush1.bf16.msra.mxu0 0
        %449 = vmatprep.subr.bf16.mxu0 0
        %450 = vmatpush1.bf16.msra.mxu0 0
        %451 = vmatprep.subr.bf16.mxu0 0
        %452 = vmatpush1.bf16.msra.mxu0 0
        %453 = vmatprep.subr.bf16.mxu0 0
        %454 = vmatpush1.bf16.msra.mxu0 0
        %455 = vmatprep.subr.bf16.mxu0 0
        %456 = vmatpush1.bf16.msra.mxu0 0
        %457 = vmatprep.mubr.bf16.mxu0 0
        %458 = vmatmul.mubr.bf16.gmra.mrb[0].mxu0 %v382
        %v459 = vpop.f32.mrb[0].mxu0
        %v460 = vadd.f32 %v271, %v459
        %v461 = vpop.f32.mrb[0].mxu0
        %v462 = vadd.f32 %v275, %v461
        %v463 = vpop.f32.mrb[0].mxu0
        %v464 = vpop.f32.mrb[0].mxu0
        %465 = vdwg.mxu0
        %466 = vmatprep.subr.bf16.mxu0 %v353
        %467 = vmatpush1.bf16.msra.mxu0 %v352
        %468 = vmatprep.subr.bf16.mxu0 %v361
        %469 = vmatpush1.bf16.msra.mxu0 %v360
        %470 = vmatprep.subr.bf16.mxu0 0
        %471 = vmatpush1.bf16.msra.mxu0 0
        %472 = vmatprep.subr.bf16.mxu0 0
        %473 = vmatpush1.bf16.msra.mxu0 0
        %474 = vmatprep.subr.bf16.mxu0 0
        %475 = vmatpush1.bf16.msra.mxu0 0
        %476 = vmatprep.subr.bf16.mxu0 0
        %477 = vmatpush1.bf16.msra.mxu0 0
        %478 = vmatprep.subr.bf16.mxu0 0
        %479 = vmatpush1.bf16.msra.mxu0 0
        %480 = vmatprep.subr.bf16.mxu0 0
        %481 = vmatpush1.bf16.msra.mxu0 0
        %482 = vmatprep.subr.bf16.mxu0 0
        %483 = vmatpush1.bf16.msra.mxu0 0
        %484 = vmatprep.subr.bf16.mxu0 0
        %485 = vmatpush1.bf16.msra.mxu0 0
        %486 = vmatprep.subr.bf16.mxu0 0
        %487 = vmatpush1.bf16.msra.mxu0 0
        %488 = vmatprep.subr.bf16.mxu0 0
        %489 = vmatpush1.bf16.msra.mxu0 0
        %490 = vmatprep.subr.bf16.mxu0 0
        %491 = vmatpush1.bf16.msra.mxu0 0
        %492 = vmatprep.subr.bf16.mxu0 0
        %493 = vmatpush1.bf16.msra.mxu0 0
        %494 = vmatprep.subr.bf16.mxu0 0
        %495 = vmatpush1.bf16.msra.mxu0 0
        %496 = vmatprep.subr.bf16.mxu0 0
        %497 = vmatpush1.bf16.msra.mxu0 0
        %498 = vmatprep.mubr.bf16.mxu0 0
        %499 = vmatmul.mubr.bf16.gmra.mrb[0].mxu0 %v382
        %v500 = vpop.f32.mrb[0].mxu0
        %v501 = vadd.f32 %v279, %v500
        %v502 = vpop.f32.mrb[0].mxu0
        %v503 = vadd.f32 %v283, %v502
        %v504 = vpop.f32.mrb[0].mxu0
        %v505 = vpop.f32.mrb[0].mxu0
        %506 = vdwg.mxu0
        %507 = vmatprep.subr.bf16.mxu0 %v355
        %508 = vmatpush1.bf16.msra.mxu0 %v354
        %509 = vmatprep.subr.bf16.mxu0 %v363
        %510 = vmatpush1.bf16.msra.mxu0 %v362
        %511 = vmatprep.subr.bf16.mxu0 0
        %512 = vmatpush1.bf16.msra.mxu0 0
        %513 = vmatprep.subr.bf16.mxu0 0
        %514 = vmatpush1.bf16.msra.mxu0 0
        %515 = vmatprep.subr.bf16.mxu0 0
        %516 = vmatpush1.bf16.msra.mxu0 0
        %517 = vmatprep.subr.bf16.mxu0 0
        %518 = vmatpush1.bf16.msra.mxu0 0
        %519 = vmatprep.subr.bf16.mxu0 0
        %520 = vmatpush1.bf16.msra.mxu0 0
        %521 = vmatprep.subr.bf16.mxu0 0
        %522 = vmatpush1.bf16.msra.mxu0 0
        %523 = vmatprep.subr.bf16.mxu0 0
        %524 = vmatpush1.bf16.msra.mxu0 0
        %525 = vmatprep.subr.bf16.mxu0 0
        %526 = vmatpush1.bf16.msra.mxu0 0
        %527 = vmatprep.subr.bf16.mxu0 0
        %528 = vmatpush1.bf16.msra.mxu0 0
        %529 = vmatprep.subr.bf16.mxu0 0
        %530 = vmatpush1.bf16.msra.mxu0 0
        %531 = vmatprep.subr.bf16.mxu0 0
        %532 = vmatpush1.bf16.msra.mxu0 0
        %533 = vmatprep.subr.bf16.mxu0 0
        %534 = vmatpush1.bf16.msra.mxu0 0
        %535 = vmatprep.subr.bf16.mxu0 0
        %536 = vmatpush1.bf16.msra.mxu0 0
        %537 = vmatprep.subr.bf16.mxu0 0
        %538 = vmatpush1.bf16.msra.mxu0 0
        %539 = vmatprep.mubr.bf16.mxu0 0
        %540 = vmatmul.mubr.bf16.gmra.mrb[0].mxu0 %v382
        %v541 = vpop.f32.mrb[0].mxu0
        %v542 = vadd.f32 %v287, %v541
        %v543 = vpop.f32.mrb[0].mxu0
        %v544 = vadd.f32 %v291, %v543
        %v545 = vpop.f32.mrb[0].mxu0
        %v546 = vpop.f32.mrb[0].mxu0
        %547 = vdwg.mxu0
        %vm548 = vcmask 1041408
        %v549 = vsel %vm548, %v419, -inf
        %550 = vmax.xlane.f32.xlu0 %v549
        %v551 = vpop.xlane.xlu0 %550
        %v552 = vsub.f32 %v419, %v551
        %v553 = vmul.f32 %v552, 1.442695
        %v554 = vpow.pop %v553
        %v555 = vsel %vm548, %v554, 0.0
        %556 = vadd.xlane.f32.xlu0 %v555
        %v557 = vpop.xlane.xlu0 %556
        %v558 = vrcp.pop %v557
        %v559 = vmul.f32 %v554, %v558
        %560 = vst [vmem:[%s236] sm:$0x3] %v559
        %v561 = vsel %vm548, %v421, -inf
        %562 = vmax.xlane.f32.xlu0 %v561
        %v563 = vpop.xlane.xlu0 %562
        %v564 = vsub.f32 %v421, %v563
        %v565 = vmul.f32 %v564, 1.442695
        %v566 = vpow.pop %v565
        %v567 = vsel %vm548, %v566, 0.0
        %568 = vadd.xlane.f32.xlu0 %v567
        %v569 = vpop.xlane.xlu0 %568
        %v570 = vrcp.pop %v569
        %v571 = vmul.f32 %v566, %v570
        %572 = vst [vmem:[%s236 + $0x2] sm:$0x3] %v571
        %v573 = vsel %vm548, %v460, -inf
        %574 = vmax.xlane.f32.xlu0 %v573
        %v575 = vpop.xlane.xlu0 %574
        %v576 = vsub.f32 %v460, %v575
        %v577 = vmul.f32 %v576, 1.442695
        %v578 = vpow.pop %v577
        %v579 = vsel %vm548, %v578, 0.0
        %580 = vadd.xlane.f32.xlu0 %v579
        %v581 = vpop.xlane.xlu0 %580
        %v582 = vrcp.pop %v581
        %v583 = vmul.f32 %v578, %v582
        %584 = vst [vmem:[%s236 + $0x4] sm:$0x3] %v583
        %v585 = vsel %vm548, %v462, -inf
        %586 = vmax.xlane.f32.xlu0 %v585
        %v587 = vpop.xlane.xlu0 %586
        %v588 = vsub.f32 %v462, %v587
        %v589 = vmul.f32 %v588, 1.442695
        %v590 = vpow.pop %v589
        %v591 = vsel %vm548, %v590, 0.0
        %592 = vadd.xlane.f32.xlu0 %v591
        %v593 = vpop.xlane.xlu0 %592
        %v594 = vrcp.pop %v593
        %v595 = vmul.f32 %v590, %v594
        %596 = vst [vmem:[%s236 + $0x6] sm:$0x3] %v595
        %v597 = vsel %vm548, %v501, -inf
        %598 = vmax.xlane.f32.xlu0 %v597
        %v599 = vpop.xlane.xlu0 %598
        %v600 = vsub.f32 %v501, %v599
        %v601 = vmul.f32 %v600, 1.442695
        %v602 = vpow.pop %v601
        %v603 = vsel %vm548, %v602, 0.0
        %604 = vadd.xlane.f32.xlu0 %v603
        %v605 = vpop.xlane.xlu0 %604
        %v606 = vrcp.pop %v605
        %v607 = vmul.f32 %v602, %v606
        %608 = vst [vmem:[%s236 + $0x8] sm:$0x3] %v607
        %v609 = vsel %vm548, %v503, -inf
        %610 = vmax.xlane.f32.xlu0 %v609
        %v611 = vpop.xlane.xlu0 %610
        %v612 = vsub.f32 %v503, %v611
        %v613 = vmul.f32 %v612, 1.442695
        %v614 = vpow.pop %v613
        %v615 = vsel %vm548, %v614, 0.0
        %616 = vadd.xlane.f32.xlu0 %v615
        %v617 = vpop.xlane.xlu0 %616
        %v618 = vrcp.pop %v617
        %v619 = vmul.f32 %v614, %v618
        %620 = vst [vmem:[%s236 + $0xa] sm:$0x3] %v619
        %v621 = vsel %vm548, %v542, -inf
        %622 = vmax.xlane.f32.xlu0 %v621
        %v623 = vpop.xlane.xlu0 %622
        %v624 = vsub.f32 %v542, %v623
        %v625 = vmul.f32 %v624, 1.442695
        %v626 = vpow.pop %v625
        %v627 = vsel %vm548, %v626, 0.0
        %628 = vadd.xlane.f32.xlu0 %v627
        %v629 = vpop.xlane.xlu0 %628
        %v630 = vrcp.pop %v629
        %v631 = vmul.f32 %v626, %v630
        %632 = vst [vmem:[%s236 + $0xc] sm:$0x3] %v631
        %v633 = vsel %vm548, %v544, -inf
        %634 = vmax.xlane.f32.xlu0 %v633
        %v635 = vpop.xlane.xlu0 %634
        %v636 = vsub.f32 %v544, %v635
        %v637 = vmul.f32 %v636, 1.442695
        %v638 = vpow.pop %v637
        %v639 = vsel %vm548, %v638, 0.0
        %640 = vadd.xlane.f32.xlu0 %v639
        %v641 = vpop.xlane.xlu0 %640
        %v642 = vrcp.pop %v641
        %v643 = vmul.f32 %v638, %v642
        %644 = vst [vmem:[%s236 + $0xe] sm:$0x3] %v643
        %s645 = sand.u32 %s102, 1
        %s646 = scalar_lea.sflag [#allocation4], %s645
        %s647 = sand.u32 %s102, 1
        %s648 = smul.addr %s647, 16
        %s649 = scalar_lea.vmem [#allocation8], %s648
        // Predicated region
        $region45: #{tpu_custom_call.1} parent=31 // pred_check
          %p650 = pneg %p112
        $region46: #{tpu_custom_call.1} parent=31 // pred_check_branch
          %652 = sbr.rel (%p650) target = $region48
        $region47: #{tpu_custom_call.1} parent=31 // pred_region
          %s653 = smul.u32 8, %s21
          %s655 = ssub.s32 256, 256
          %656 = vsyncadd %s646, %s655
          %s657 = smul.addr %s653, 32
          %s658 = scalar_lea.hbm %s3, %s657
          %s660 = sshll.u32 %s649, 4
          %s661 = int_to_ptr.vmem [resolvable:$true] %s660
          %663 = dma.vmem_to_hbm [thread:$0]  %s661, 256, %s658, %s646
        $region48: #{tpu_custom_call.1} parent=31 // pred_fallthru
          _
      $region32: #{tpu_custom_call.1} parent=5 // pred_fallthru
        _
      %p664 = scmp.le.s32.totalorder 2, %s16
      // Predicated region
      $region49: #{tpu_custom_call.1} parent=5 // pred_check
        %p665 = pneg %p664
      $region50: #{tpu_custom_call.1} parent=5 // pred_check_branch
        %667 = sbr.rel (%p665) target = $region52
      $region51: #{tpu_custom_call.1} parent=5 // pred_region
        %s668 = ssub.s32 %s16, 2
        // Predicated region
        $region53: #{tpu_custom_call.1} parent=51 // pred_check
          %p669 = pneg %p118
        $region54: #{tpu_custom_call.1} parent=51 // pred_check_branch
          %671 = sbr.rel (%p669) target = $region56
        $region55: #{tpu_custom_call.1} parent=51 // pred_region
          %s672 = sand.u32 %s103, 1
          %s673 = scalar_lea.sflag [#allocation4], %s672
          %s674 = sand.u32 %s103, 1
          %s675 = smul.addr %s674, 16
          %s676 = scalar_lea.vmem [#allocation8], %s675
          %677 = dma.done %s673, 256
        $region56: #{tpu_custom_call.1} parent=51 // pred_fallthru
          _
      $region52: #{tpu_custom_call.1} parent=5 // pred_fallthru
        _
    $region6: #{tpu_custom_call.1} parent=1 // loop_footer
      %s20 = sadd.s32 1, %s16
    $region7: #{tpu_custom_call.1} parent=1 // loop_footer_branch
      %15 = sbr.rel target = $region3
    $region8: #{tpu_custom_call.1} parent=1 // loop_exit
      _
    %678 = vsyncpa [#allocation3], 1
    %s679 = scalar_lea.sflag [#allocation3], 1
    %680 = vsyncpa %s679, 1
    %681 = vsyncpa [#allocation6], 1
    %s682 = scalar_lea.sflag [#allocation6], 1
    %683 = vsyncpa %s682, 1
    %684 = vsyncpa [#allocation4], 1
    %s685 = scalar_lea.sflag [#allocation4], 1
    %686 = vsyncpa %s685, 1

</llo_original>
